<compile_context>
chip_gen: v7x
topology: tpu7x:2x2x1
jax: 0.10.0
libtpu: 0.0.40
codegen_flags: <defaults>
</compile_context>

<pallas_src>
import functools

import jax
import jax.numpy as jnp
from jax.experimental import pallas as pl
from jax.experimental.pallas import tpu as pltpu


def _round_up(x: int, m: int) -> int:
    return ((x + m - 1) // m) * m


def _fc_relu_kernel(x_ref, w_ref, b_ref, o_ref, acc_ref):
    # x_ref: (tm, tk), w_ref: (tk, tn), b_ref: (1, tn), o_ref: (tm, tn)
    # acc_ref: (tm, tn) f32 scratch, resident across the K grid axis.
    k = pl.program_id(2)

    @pl.when(k == 0)
    def _init():
        acc_ref[...] = jnp.zeros_like(acc_ref)

    acc_ref[...] += jnp.dot(x_ref[...], w_ref[...],
                            preferred_element_type=jnp.float32)

    @pl.when(k == pl.num_programs(2) - 1)
    def _finalize():
        y = acc_ref[...] + b_ref[...].astype(jnp.float32)  # bias (broadcast rows)
        y = jnp.maximum(y, 0.0)                             # ReLU
        # norm='none' and dropout p=0.0 are identities -> nothing to do.
        o_ref[...] = y.astype(o_ref.dtype)


@functools.partial(jax.jit, static_argnames=("tm", "tn", "tk"))
def fc_block(x, w, b, *, tm=256, tn=512, tk=512):
    """Fused FCBlock forward for the default config: relu(x @ w.T + b).

    x : (M, K)   float32 or bfloat16
    w : (N, K)   PyTorch nn.Linear weight layout (dim_out, dim_in)
    b : (N,)     bias

    Only valid for bias=True, activation='relu', norm='none', dropout=0.0.
    """
    M, K = x.shape
    N, K2 = w.shape
    assert K == K2 and b.shape == (N,), "shape mismatch"

    # Clamp tiles to the (aligned) problem size; keep MXU / lane alignment.
    tm = min(tm, _round_up(M, 8))
    tn = min(tn, _round_up(N, 128))
    tk = min(tk, _round_up(K, 128))

    Mp, Np, Kp = _round_up(M, tm), _round_up(N, tn), _round_up(K, tk)

    w_t = jnp.transpose(w)  # (K, N) so the kernel does a plain row-major matmul
    xp = x if (Mp, Kp) == (M, K) else jnp.pad(x, ((0, Mp - M), (0, Kp - K)))
    wp = w_t if (Kp, Np) == (K, N) else jnp.pad(w_t, ((0, Kp - K), (0, Np - N)))
    bp = (b if Np == N else jnp.pad(b, (0, Np - N))).reshape(1, Np)

    grid = (Mp // tm, Np // tn, Kp // tk)

    # VMEM budget: double-buffered x/w/bias/out tiles + f32 accumulator,
    # plus headroom; capped at 48 MiB so it is safe on v7x (64 MiB VMEM/TC).
    itemsize = jnp.dtype(x.dtype).itemsize
    vmem_bytes = (2 * (tm * tk + tk * tn + tn) * itemsize
                  + 2 * tm * tn * itemsize
                  + tm * tn * 4
                  + (4 << 20))
    vmem_bytes = int(max(min(vmem_bytes, 48 << 20), 16 << 20))

    out = pl.pallas_call(
        _fc_relu_kernel,
        out_shape=jax.ShapeDtypeStruct((Mp, Np), x.dtype),
        grid_spec=pltpu.PrefetchScalarGridSpec(
            num_scalar_prefetch=0,
            grid=grid,
            in_specs=[
                pl.BlockSpec((tm, tk), lambda i, j, k: (i, k)),  # x row/K tile
                pl.BlockSpec((tk, tn), lambda i, j, k: (k, j)),  # weight K/col tile
                pl.BlockSpec((1, tn), lambda i, j, k: (0, j)),   # bias col tile
            ],
            out_specs=pl.BlockSpec((tm, tn), lambda i, j, k: (i, j)),
            scratch_shapes=[pltpu.VMEM((tm, tn), jnp.float32)],
        ),
        compiler_params=pltpu.CompilerParams(
            dimension_semantics=("parallel", "parallel", "arbitrary"),
            vmem_limit_bytes=vmem_bytes),
    )(xp, wp, bp)

    return out[:M, :N]


def _init_linear_params(key, dim_in, dim_out, dtype=jnp.float32):
    """Deterministic params mimicking nn.Linear's uniform(-1/sqrt(K), 1/sqrt(K))."""
    kw, kb = jax.random.split(key)
    bound = 1.0 / (dim_in ** 0.5)
    w = jax.random.uniform(kw, (dim_out, dim_in), minval=-bound, maxval=bound,
                           dtype=jnp.float32).astype(dtype)
    b = jax.random.uniform(kb, (dim_out,), minval=-bound, maxval=bound,
                           dtype=jnp.float32).astype(dtype)
    return w, b


if __name__ == "__main__":
    key = jax.random.PRNGKey(0)
    k1, k2, k3 = jax.random.split(key, 3)

    # --- 1) Small shape consistent with the module: batch=8, dim_in=32, dim_out=256.
    #        Collapses to a single-block kernel (grid == (1,1,1)): no pipeline overhead.
    batch, dim_in, dim_out = 8, 32, 256
    x = jax.random.normal(k1, (batch, dim_in), dtype=jnp.float32)
    w, b = _init_linear_params(k2, dim_in, dim_out)

    out = fc_block(x, w, b)
    jax.block_until_ready(out)
    ref = jnp.maximum(x @ w.T + b, 0.0)
    assert out.shape == (batch, dim_out)
    assert jnp.allclose(out, ref, atol=1e-5, rtol=1e-5), "f32 small-shape mismatch"

    # --- 2) Ragged, multi-tile shape: exercises M/N/K padding, the K grid axis,
    #        the accumulator init/finalize path and megacore-parallel M/N axes.
    M2, K2_, N2 = 300, 1152, 700
    x2 = jax.random.normal(k3, (M2, K2_), dtype=jnp.float32)
    w2, b2 = _init_linear_params(jax.random.PRNGKey(1), K2_, N2)

    out2 = fc_block(x2, w2, b2)
    jax.block_until_ready(out2)
    ref2 = jnp.maximum(x2 @ w2.T + b2, 0.0)
    assert out2.shape == (M2, N2)
    assert jnp.allclose(out2, ref2, atol=1e-4, rtol=1e-4), "f32 tiled-shape mismatch"

    # --- 3) bf16 path: halves HBM weight traffic / hits MXU bf16 peak.
    x2b, w2b, b2b = x2.astype(jnp.bfloat16), w2.astype(jnp.bfloat16), b2.astype(jnp.bfloat16)
    out3 = fc_block(x2b, w2b, b2b)
    jax.block_until_ready(out3)
    ref3 = jnp.maximum(x2b.astype(jnp.float32) @ w2b.astype(jnp.float32).T
                       + b2b.astype(jnp.float32), 0.0)
    assert out3.dtype == jnp.bfloat16
    assert jnp.allclose(out3.astype(jnp.float32), ref3, atol=5e-2, rtol=5e-2), \
        "bf16 path mismatch"

    # TODO(synk): norm='batch'/'layer', prelu/sigmoid/tanh activations and
    # dropout>0 variants are not part of the default FCBlock config and are
    # not implemented in this kernel.
    print("KERNEL_OK")
</pallas_src>

<mosaic_0001>
module attributes {stable_mosaic.version = 11 : i64} {
  func.func @_fc_relu_kernel(%arg0: i32, %arg1: i32, %arg2: i32, %arg3: memref<8x128xf32, #tpu.memory_space<vmem>>, %arg4: memref<128x256xf32, #tpu.memory_space<vmem>>, %arg5: memref<1x256xf32, #tpu.memory_space<vmem>>, %arg6: memref<8x256xf32, #tpu.memory_space<vmem>>, %arg7: memref<8x256xf32, #tpu.memory_space<vmem>>) attributes {dimension_semantics = [#tpu.dimension_semantics<parallel>, #tpu.dimension_semantics<parallel>, #tpu.dimension_semantics<arbitrary>], iteration_bounds = array<i64: 1, 1, 1>, scalar_prefetch = 0 : i64, scratch_operands = 1 : i64, tpu.core_type = #tpu.core_type<tc>, window_params = [{transform_indices = @transform_0, window_bounds = array<i64: 8, 128>}, {transform_indices = @transform_1, window_bounds = array<i64: 128, 256>}, {transform_indices = @transform_2, window_bounds = array<i64: 1, 256>}, {transform_indices = @transform_3, window_bounds = array<i64: 8, 256>}]} {
    %c0_i32 = arith.constant 0 : i32
    %0 = arith.cmpi eq, %arg2, %c0_i32 : i32
    %1 = arith.extui %0 : i1 to i32
    %c0_i32_0 = arith.constant 0 : i32
    %2 = arith.cmpi ne, %1, %c0_i32_0 : i32
    scf.if %2 {
      %cst_10 = arith.constant 0.000000e+00 : f32
      %12 = vector.broadcast %cst_10 : f32 to vector<8x256xf32>
      %c0_11 = arith.constant 0 : index
      %c0_12 = arith.constant 0 : index
      %13 = vector.load %arg7[%c0_11, %c0_12] : memref<8x256xf32, #tpu.memory_space<vmem>>, vector<8x256xf32>
      tpu.vector_store %arg7[%c0_11, %c0_12], %12 {strides = array<i32>} : memref<8x256xf32, #tpu.memory_space<vmem>>, vector<8x256xf32>,
    } else {
    }
    %c0 = arith.constant 0 : index
    %c0_1 = arith.constant 0 : index
    %3 = vector.load %arg7[%c0, %c0_1] : memref<8x256xf32, #tpu.memory_space<vmem>>, vector<8x256xf32>
    %c0_2 = arith.constant 0 : index
    %c0_3 = arith.constant 0 : index
    %4 = vector.load %arg3[%c0_2, %c0_3] : memref<8x128xf32, #tpu.memory_space<vmem>>, vector<8x128xf32>
    %c0_4 = arith.constant 0 : index
    %c0_5 = arith.constant 0 : index
    %5 = vector.load %arg4[%c0_4, %c0_5] : memref<128x256xf32, #tpu.memory_space<vmem>>, vector<128x256xf32>
    %cst = arith.constant dense<0.000000e+00> : vector<8x256xf32>
    %6 = tpu.matmul %4, %5, %cst {dimension_numbers = #tpu.dot_dimension_numbers<[1], [0], [0], [1], [0, 0, 1, 1], [], []>} : vector<8x128xf32>, vector<128x256xf32>, vector<8x256xf32> -> vector<8x256xf32>
    %7 = arith.addf %3, %6 : vector<8x256xf32>
    %c0_6 = arith.constant 0 : index
    %c0_7 = arith.constant 0 : index
    %8 = vector.load %arg7[%c0_6, %c0_7] : memref<8x256xf32, #tpu.memory_space<vmem>>, vector<8x256xf32>
    tpu.vector_store %arg7[%c0_6, %c0_7], %7 {strides = array<i32>} : memref<8x256xf32, #tpu.memory_space<vmem>>, vector<8x256xf32>,
    %c0_i32_8 = arith.constant 0 : i32
    %9 = arith.cmpi eq, %arg2, %c0_i32_8 : i32
    %10 = arith.extui %9 : i1 to i32
    %c0_i32_9 = arith.constant 0 : i32
    %11 = arith.cmpi ne, %10, %c0_i32_9 : i32
    scf.if %11 {
      %c0_10 = arith.constant 0 : index
      %c0_11 = arith.constant 0 : index
      %12 = vector.load %arg7[%c0_10, %c0_11] : memref<8x256xf32, #tpu.memory_space<vmem>>, vector<8x256xf32>
      %c0_12 = arith.constant 0 : index
      %c0_13 = arith.constant 0 : index
      %13 = vector.load %arg5[%c0_12, %c0_13] : memref<1x256xf32, #tpu.memory_space<vmem>>, vector<1x256xf32>
      %14 = vector.broadcast %13 : vector<1x256xf32> to vector<8x256xf32>
      %15 = arith.addf %12, %14 : vector<8x256xf32>
      %cst_14 = arith.constant 0.000000e+00 : f32
      %16 = vector.broadcast %cst_14 : f32 to vector<8x256xf32>
      %17 = arith.maximumf %15, %16 : vector<8x256xf32>
      %c0_15 = arith.constant 0 : index
      %c0_16 = arith.constant 0 : index
      %18 = vector.load %arg6[%c0_15, %c0_16] : memref<8x256xf32, #tpu.memory_space<vmem>>, vector<8x256xf32>
      tpu.vector_store %arg6[%c0_15, %c0_16], %17 {strides = array<i32>} : memref<8x256xf32, #tpu.memory_space<vmem>>, vector<8x256xf32>,
    } else {
    }
    return
  }
  func.func @transform_0(%arg0: i32, %arg1: i32, %arg2: i32) -> (i32, i32) {
    %c0_i32 = arith.constant 0 : i32
    return %arg0, %arg2 : i32, i32
  }
  func.func @transform_1(%arg0: i32, %arg1: i32, %arg2: i32) -> (i32, i32) {
    %c0_i32 = arith.constant 0 : i32
    return %arg2, %arg1 : i32, i32
  }
  func.func @transform_2(%arg0: i32, %arg1: i32, %arg2: i32) -> (i32, i32) {
    %c0_i32 = arith.constant 0 : i32
    %c0_i32_0 = arith.constant 0 : i32
    return %c0_i32, %arg1 : i32, i32
  }
  func.func @transform_3(%arg0: i32, %arg1: i32, %arg2: i32) -> (i32, i32) {
    %c0_i32 = arith.constant 0 : i32
    return %arg0, %arg1 : i32, i32
  }
}

</mosaic_0001>

<llo_original>
// kernel: fc_block.1
$region0: #{fc_block.1}
  #allocation0 [shape = 'u32[]', space=smem, size = 0x4, offset = 0x4, fixed_abs, tag = 'smem constant byte address 0x4 - core index']
  #allocation1 [shape = 'u32[144,128]{1,0:T(1,128)}', space=vmem, size = 0x12000, scoped, tag = 'internal scratch']
  #allocation2 [shape = 'f32[8,256]{1,0:T(8,128)}', space=vmem, size = 0x2000, scoped, tag = 'scratch operand']
  %s0 = inlined_call_operand.vmem [shape: f32[8,128], index: 0, kind: input, shape index: {}]
  %s1 = inlined_call_operand.vmem [shape: f32[128,256], index: 1, kind: input, shape index: {}]
  %s2 = inlined_call_operand.vmem [shape: f32[1,256], index: 2, kind: input, shape index: {}]
  %s3 = inlined_call_operand.hbm [shape: f32[8,256], index: 3, kind: output, shape index: {}]
  %s4 = sld [smem:[#allocation0]]
  $region30: #{fc_block.1} parent=0
    _
  %s6 = ssub.s32 1, %s4
  %s7 = scalar_select 0, %s6, %s4
  $region1: #{fc_block.1} parent=0
    #allocation3 [shape = 'u8[8192]{0}', space=vmem, size = 0x2000, scoped, tag = 'output window, operand 0, single buffered']
    #allocation4 [shape = 's32[1]{0}', space=sflag, size = 0x4, scoped, tag = 'scoped memory for fc_block.1']
    %8 = vsyncpa [#allocation4], 0
    // Predicated region
    $region2: #{fc_block.1} parent=1 // pred_check
      _
    $region3: #{fc_block.1} parent=1 // pred_check_branch
      %10 = sbr.rel (0) target = $region5
    $region4: #{fc_block.1} parent=1 // pred_region
      _
    $region5: #{fc_block.1} parent=1 // pred_fallthru
      _
    // Predicated region
    $region6: #{fc_block.1} parent=1 // pred_check
      _
    $region7: #{fc_block.1} parent=1 // pred_check_branch
      %12 = sbr.rel (0) target = $region9
    $region8: #{fc_block.1} parent=1 // pred_region
      _
    $region9: #{fc_block.1} parent=1 // pred_fallthru
      _
    // Predicated region
    $region10: #{fc_block.1} parent=1 // pred_check
      _
    $region11: #{fc_block.1} parent=1 // pred_check_branch
      %14 = sbr.rel (0) target = $region13
    $region12: #{fc_block.1} parent=1 // pred_region
      _
    $region13: #{fc_block.1} parent=1 // pred_fallthru
      _
    %p15 = scmp.eq.s32.totalorder 0, 0
    // Predicated region
    $region14: #{fc_block.1} parent=1 // pred_check
      %p16 = pneg %p15
    $region15: #{fc_block.1} parent=1 // pred_check_branch
      %18 = sbr.rel (%p16) target = $region17
    $region16: #{fc_block.1} parent=1 // pred_region
      %19 = vst [vmem:[#allocation2] sm:$0xff] 0.0
      %20 = vst [vmem:[#allocation2 + $0x8] sm:$0xff] 0.0
    $region17: #{fc_block.1} parent=1 // pred_fallthru
      _
    %v21 = vld [vmem:[#allocation2] sm:$0xff]
    %v22 = vld [vmem:[#allocation2 + $0x8] sm:$0xff]
    %v23 = vld [vmem:[%s0] sm:$0xff]
    %v24 = vld [vmem:[%s1] sm:$0xff]
    %v25 = vld [vmem:[%s1 + $0x8] sm:$0xff]
    %v26 = vld [vmem:[%s1 + $0x10] sm:$0xff]
    %v27 = vld [vmem:[%s1 + $0x18] sm:$0xff]
    %v28 = vld [vmem:[%s1 + $0x20] sm:$0xff]
    %v29 = vld [vmem:[%s1 + $0x28] sm:$0xff]
    %v30 = vld [vmem:[%s1 + $0x30] sm:$0xff]
    %v31 = vld [vmem:[%s1 + $0x38] sm:$0xff]
    %v32 = vld [vmem:[%s1 + $0x40] sm:$0xff]
    %v33 = vld [vmem:[%s1 + $0x48] sm:$0xff]
    %v34 = vld [vmem:[%s1 + $0x50] sm:$0xff]
    %v35 = vld [vmem:[%s1 + $0x58] sm:$0xff]
    %v36 = vld [vmem:[%s1 + $0x60] sm:$0xff]
    %v37 = vld [vmem:[%s1 + $0x68] sm:$0xff]
    %v38 = vld [vmem:[%s1 + $0x70] sm:$0xff]
    %v39 = vld [vmem:[%s1 + $0x78] sm:$0xff]
    %v40 = vld [vmem:[%s1 + $0x80] sm:$0xff]
    %v41 = vld [vmem:[%s1 + $0x88] sm:$0xff]
    %v42 = vld [vmem:[%s1 + $0x90] sm:$0xff]
    %v43 = vld [vmem:[%s1 + $0x98] sm:$0xff]
    %v44 = vld [vmem:[%s1 + $0xa0] sm:$0xff]
    %v45 = vld [vmem:[%s1 + $0xa8] sm:$0xff]
    %v46 = vld [vmem:[%s1 + $0xb0] sm:$0xff]
    %v47 = vld [vmem:[%s1 + $0xb8] sm:$0xff]
    %v48 = vld [vmem:[%s1 + $0xc0] sm:$0xff]
    %v49 = vld [vmem:[%s1 + $0xc8] sm:$0xff]
    %v50 = vld [vmem:[%s1 + $0xd0] sm:$0xff]
    %v51 = vld [vmem:[%s1 + $0xd8] sm:$0xff]
    %v52 = vld [vmem:[%s1 + $0xe0] sm:$0xff]
    %v53 = vld [vmem:[%s1 + $0xe8] sm:$0xff]
    %v54 = vld [vmem:[%s1 + $0xf0] sm:$0xff]
    %v55 = vld [vmem:[%s1 + $0xf8] sm:$0xff]
    %56 = vmatprep.subr.mxu0 %v25
    %57 = vmatpush1.msra.mxu0 %v24
    %58 = vmatprep.subr.mxu0 %v27
    %59 = vmatpush1.msra.mxu0 %v26
    %60 = vmatprep.subr.mxu0 %v29
    %61 = vmatpush1.msra.mxu0 %v28
    %62 = vmatprep.subr.mxu0 %v31
    %63 = vmatpush1.msra.mxu0 %v30
    %64 = vmatprep.subr.mxu0 %v33
    %65 = vmatpush1.msra.mxu0 %v32
    %66 = vmatprep.subr.mxu0 %v35
    %67 = vmatpush1.msra.mxu0 %v34
    %68 = vmatprep.subr.mxu0 %v37
    %69 = vmatpush1.msra.mxu0 %v36
    %70 = vmatprep.subr.mxu0 %v39
    %71 = vmatpush1.msra.mxu0 %v38
    %72 = vmatprep.subr.mxu0 %v41
    %73 = vmatpush1.msra.mxu0 %v40
    %74 = vmatprep.subr.mxu0 %v43
    %75 = vmatpush1.msra.mxu0 %v42
    %76 = vmatprep.subr.mxu0 %v45
    %77 = vmatpush1.msra.mxu0 %v44
    %78 = vmatprep.subr.mxu0 %v47
    %79 = vmatpush1.msra.mxu0 %v46
    %80 = vmatprep.subr.mxu0 %v49
    %81 = vmatpush1.msra.mxu0 %v48
    %82 = vmatprep.subr.mxu0 %v51
    %83 = vmatpush1.msra.mxu0 %v50
    %84 = vmatprep.subr.mxu0 %v53
    %85 = vmatpush1.msra.mxu0 %v52
    %86 = vmatprep.subr.mxu0 %v55
    %87 = vmatpush1.msra.mxu0 %v54
    %88 = vmatprep.subr.mxu0 0.0
    %89 = vmatpush1.msra.mxu0 0.0
    %90 = vmatprep.subr.mxu0 0.0
    %91 = vmatpush1.msra.mxu0 0.0
    %92 = vmatprep.subr.mxu0 0.0
    %93 = vmatpush1.msra.mxu0 0.0
    %94 = vmatprep.subr.mxu0 0.0
    %95 = vmatpush1.msra.mxu0 0.0
    %96 = vmatprep.subr.mxu0 0.0
    %97 = vmatpush1.msra.mxu0 0.0
    %98 = vmatprep.subr.mxu0 0.0
    %99 = vmatpush1.msra.mxu0 0.0
    %100 = vmatprep.subr.mxu0 0.0
    %101 = vmatpush1.msra.mxu0 0.0
    %102 = vmatprep.subr.mxu0 0.0
    %103 = vmatpush1.msra.mxu0 0.0
    %104 = vmatprep.subr.mxu0 0.0
    %105 = vmatpush1.msra.mxu0 0.0
    %106 = vmatprep.subr.mxu0 0.0
    %107 = vmatpush1.msra.mxu0 0.0
    %108 = vmatprep.subr.mxu0 0.0
    %109 = vmatpush1.msra.mxu0 0.0
    %110 = vmatprep.subr.mxu0 0.0
    %111 = vmatpush1.msra.mxu0 0.0
    %112 = vmatprep.subr.mxu0 0.0
    %113 = vmatpush1.msra.mxu0 0.0
    %114 = vmatprep.subr.mxu0 0.0
    %115 = vmatpush1.msra.mxu0 0.0
    %116 = vmatprep.subr.mxu0 0.0
    %117 = vmatpush1.msra.mxu0 0.0
    %118 = vmatprep.subr.mxu0 0.0
    %119 = vmatpush1.msra.mxu0 0.0
    %120 = vmatprep.mubr.f32.mxu0 0.0
    %121 = vmatmul.mubr.f32.gmra.mrb[0].mxu0 %v23
    %v122 = vpop.f32.mrb[0].mxu0
    %v123 = vadd.f32 0.0, %v122
    %v124 = vpop.f32.mrb[0].mxu0
    %v125 = vadd.f32 0.0, %v124
    %126 = vdwg.mxu0
    %v127 = vadd.f32 %v21, %v123
    %v128 = vadd.f32 %v22, %v125
    %129 = vst [vmem:[#allocation2] sm:$0xff] %v127
    %130 = vst [vmem:[#allocation2 + $0x8] sm:$0xff] %v128
    // Predicated region
    $region18: #{fc_block.1} parent=1 // pred_check
      %p131 = pneg %p15
    $region19: #{fc_block.1} parent=1 // pred_check_branch
      %133 = sbr.rel (%p131) target = $region21
    $region20: #{fc_block.1} parent=1 // pred_region
      %v134 = vld [vmem:[#allocation2] sm:$0xff]
      %v135 = vld [vmem:[#allocation2 + $0x8] sm:$0xff]
      %v136 = vld [vmem:[%s2] sm:$0x3]
      %v138 = vlaneseq
      %v139 = vshrl.u32 %v138, 7
      %v140 = vsub.s32 0, %v139
      %v141 = vrot.slane %v136, %v140
      %v142 = vlaneseq
      %v143 = vshrl.u32 %v142, 7
      %v144 = vsub.s32 1, %v143
      %v145 = vrot.slane %v136, %v144
      %v148 = vadd.f32 %v134, %v141
      %v149 = vadd.f32 %v135, %v145
      %v150 = vmax.f32 %v148, 0.0
      %v151 = vmax.f32 %v149, 0.0
      %152 = vst [vmem:[#allocation3] sm:$0xff] %v150
      %153 = vst [vmem:[#allocation3 + $0x8] sm:$0xff] %v151
    $region21: #{fc_block.1} parent=1 // pred_fallthru
      _
    // Predicated region
    $region22: #{fc_block.1} parent=1 // pred_check
      _
    $region23: #{fc_block.1} parent=1 // pred_check_branch
      %155 = sbr.rel (0) target = $region25
    $region24: #{fc_block.1} parent=1 // pred_region
      %s157 = ssub.s32 256, 256
      %158 = vsyncadd [#allocation4], %s157
      %s160 = sshll.u32 [#allocation3], 4
      %s161 = int_to_ptr.vmem [resolvable:$true] %s160
      %163 = dma.vmem_to_hbm [thread:$0]  %s161, 256, %s3, [#allocation4]
    $region25: #{fc_block.1} parent=1 // pred_fallthru
      _
    // Predicated region
    $region26: #{fc_block.1} parent=1 // pred_check
      _
    $region27: #{fc_block.1} parent=1 // pred_check_branch
      %165 = sbr.rel (0) target = $region29
    $region28: #{fc_block.1} parent=1 // pred_region
      %166 = dma.done [#allocation4], 256
    $region29: #{fc_block.1} parent=1 // pred_fallthru
      _
    %167 = vsyncpa [#allocation4], 1

</llo_original>
